<compile_context>
chip_gen: v7x
topology: tpu7x:2x2x1
jax: 0.10.0
libtpu: 0.0.40
codegen_flags: <defaults>
</compile_context>

<pallas_src>
import jax
import jax.numpy as jnp
from jax.experimental import pallas as pl
from jax.experimental.pallas import tpu as pltpu


def _round_up(x, m):
    return ((x + m - 1) // m) * m


# ----------------------------- Pallas kernel ------------------------------- #

def _pointwise_mlp_kernel(feat_ref, fi_ref, wcat_ref, wfic_ref, o_ref, acc_ref):
    """Streamed (over the neighbor axis) 1x1-conv + max-reduce + ReLU.

    feat_ref : (1, TN1, TS, K_pad)  bf16  concat([dp, fj], -1), zero-padded K
    fi_ref   : (1, TN1, C_in)       f32   center (slot-0) features
    wcat_ref : (K_pad, C_out_pad)   bf16  [W_dp ; W_df]  (BN folded, zero padded)
    wfic_ref : (C_in, C_out_pad)    f32   (W_fi - W_df)  (BN folded, zero padded)
    o_ref    : (1, TN1, C_out_pad)  f32
    acc_ref  : (TN1, C_out_pad)     f32   running max over neighbor tiles
    """
    s = pl.program_id(2)

    @pl.when(s == 0)
    def _():
        acc_ref[...] = jnp.full_like(acc_ref, -jnp.inf)

    tn1 = feat_ref.shape[1]
    ts = feat_ref.shape[2]
    k_pad = feat_ref.shape[3]
    c_out_pad = o_ref.shape[2]

    # One lane-dense MXU matmul over the concatenated (padded) feature axis.
    feat = feat_ref[0].reshape(tn1 * ts, k_pad)                 # bf16
    z = jnp.dot(feat, wcat_ref[...], preferred_element_type=jnp.float32)
    z = z.reshape(tn1, ts, c_out_pad)
    acc_ref[...] = jnp.maximum(acc_ref[...], jnp.max(z, axis=1))

    @pl.when(s == pl.num_programs(2) - 1)
    def _():
        # Per-point center-feature term, computed once (S x smaller matmul).
        bias = jnp.dot(fi_ref[0], wfic_ref[...],
                       preferred_element_type=jnp.float32)
        # ReLU after the reduction: relu(max_s z_s + c) == max_s relu(z_s + c).
        o_ref[0] = jnp.maximum(acc_ref[...] + bias, 0.0).astype(o_ref.dtype)


def pointwise_mlp_pallas(rel_pos, grouped_feats, w_folded_t):
    """rel_pos [B,N1,S,3], grouped_feats [B,N1,S,Cin] (f32),
    w_folded_t [3+2*Cin, Cout] (f32, BN folded, row order [dp, fi, df]).
    Returns [B, N1, Cout] f32."""
    B, N1, S, _ = rel_pos.shape
    C_in = grouped_feats.shape[-1]
    C_feat, C_out = w_folded_t.shape
    assert C_feat == 3 + 2 * C_in

    # --- weight algebra: dp@Wdp + fi@Wfi + (fj-fi)@Wdf
    #                  == cat(dp,fj)@[Wdp;Wdf] + fi@(Wfi-Wdf) ------------------
    w_dp = w_folded_t[:3]
    w_fi = w_folded_t[3:3 + C_in]
    w_df = w_folded_t[3 + C_in:]

    K = 3 + C_in
    K_pad = _round_up(K, 128)                 # lane-dense matmul K
    C_out_pad = _round_up(C_out, 128)         # lane-dense (unmasked) stores

    w_cat = jnp.zeros((K_pad, C_out_pad), jnp.float32)
    w_cat = w_cat.at[:3, :C_out].set(w_dp).at[3:K, :C_out].set(w_df)
    w_fic = jnp.zeros((C_in, C_out_pad), jnp.float32)
    w_fic = w_fic.at[:, :C_out].set(w_fi - w_df)

    # --- neighbor-axis (S) tiling; edge-pad (duplicates a real neighbor, safe
    #     under max reduction) --------------------------------------------------
    TS_MAX = 64
    S_pad = _round_up(S, 8)
    if S_pad > TS_MAX:
        S_pad = _round_up(S, TS_MAX)
        TS = TS_MAX
    else:
        TS = S_pad

    # --- point-axis (N1) tile sized to a conservative VMEM budget (double-
    #     buffered bf16 feature tile dominates); fits default 32 MiB scoped
    #     VMEM on v5e/v6e/v7x ---------------------------------------------------
    feat_bytes_per_row = 2 * TS * K_pad * 2          # 2 buffers x bf16
    max_rows = max(8, (16 * 1024 * 1024) // feat_bytes_per_row)
    TN1 = min(256, (max_rows // 8) * 8)
    if N1 <= TN1:
        TN1 = N1
        N1_pad = N1
    else:
        N1_pad = _round_up(N1, TN1)

    # --- input prep: channels-last concat, padding, dtype casts ----------------
    feat = jnp.concatenate([rel_pos, grouped_feats], axis=-1)            # [B,N1,S,K]
    feat = jnp.pad(feat, ((0, 0), (0, 0), (0, S_pad - S), (0, 0)), mode="edge")
    feat = jnp.pad(feat, ((0, 0), (0, N1_pad - N1), (0, 0), (0, K_pad - K)))
    fi = jnp.pad(grouped_feats[:, :, 0, :], ((0, 0), (0, N1_pad - N1), (0, 0)))

    feat = feat.astype(jnp.bfloat16)
    w_cat = w_cat.astype(jnp.bfloat16)
    fi = fi.astype(jnp.float32)               # tiny matmul -> keep f32
    w_fic = w_fic.astype(jnp.float32)

    grid = (B, N1_pad // TN1, S_pad // TS)

    out = pl.pallas_call(
        _pointwise_mlp_kernel,
        out_shape=jax.ShapeDtypeStruct((B, N1_pad, C_out_pad), jnp.float32),
        grid=grid,
        in_specs=[
            pl.BlockSpec((1, TN1, TS, K_pad), lambda b, i, s: (b, i, s, 0)),
            pl.BlockSpec((1, TN1, C_in), lambda b, i, s: (b, i, 0)),
            pl.BlockSpec((K_pad, C_out_pad), lambda b, i, s: (0, 0)),
            pl.BlockSpec((C_in, C_out_pad), lambda b, i, s: (0, 0)),
        ],
        out_specs=pl.BlockSpec((1, TN1, C_out_pad), lambda b, i, s: (b, i, 0)),
        scratch_shapes=[pltpu.VMEM((TN1, C_out_pad), jnp.float32)],
        compiler_params=pltpu.CompilerParams(
            dimension_semantics=("parallel", "parallel", "arbitrary"),
            vmem_limit_bytes=32 * 1024 * 1024,
        ),
    )(feat, fi, w_cat, w_fic)

    return out[:, :N1, :C_out]


# -------------------- JAX glue: MaskedQueryAndGroup ------------------------ #

def masked_query_and_group(query_xyz, support_xyz, query_mask, support_mask,
                           support_features, *, radius, nsample):
    """Masked ball query + grouping (use_xyz=False, normalize_xyz=True).

    Returns:
      rel_pos        [B, N1, nsample, 3]   (grouped_xyz - query_xyz) / radius
      grouped_feats  [B, N1, nsample, C_in]
      nbr_mask       [B, N1, nsample]      1.0 where the neighbor slot is valid
    """
    B, N1, _ = query_xyz.shape
    N2 = support_xyz.shape[1]

    diff = query_xyz[:, :, None, :] - support_xyz[:, None, :, :]          # [B,N1,N2,3]
    dist2 = jnp.sum(diff * diff, axis=-1)
    valid = (dist2 < radius * radius) & (support_mask[:, None, :] > 0)

    # first `nsample` valid support indices (ascending), pad with the first one.
    key = jnp.where(valid, jnp.arange(N2)[None, None, :], N2)
    sorted_keys = jnp.sort(key, axis=-1)[..., :nsample]                   # [B,N1,S]
    slot_valid = sorted_keys < N2
    first = sorted_keys[..., :1]
    fill = jnp.where(first < N2, first, 0)
    # TODO(synk): when a query point has zero valid neighbors, fill=0 gathers
    # support point 0 regardless of radius/mask (same as the original reference
    # glue); the masked CUDA op would exclude it.
    idx = jnp.where(slot_valid, sorted_keys, fill).astype(jnp.int32)
    nbr_mask = slot_valid.astype(jnp.float32)

    grouped_xyz = jnp.take_along_axis(
        support_xyz[:, None, :, :], idx[..., None], axis=2)               # [B,N1,S,3]
    rel_pos = (grouped_xyz - query_xyz[:, :, None, :]) / radius           # normalize_xyz

    feats = jnp.transpose(support_features, (0, 2, 1))                    # [B,N2,Cin]
    grouped_feats = jnp.take_along_axis(
        feats[:, None, :, :], idx[..., None], axis=2)                     # [B,N1,S,Cin]
    return rel_pos, grouped_feats, nbr_mask


def pointwise_mlp_forward(query_xyz, support_xyz, query_mask, support_mask,
                          support_features, conv_weight, *, radius, nsample):
    """Full forward; returns [B, C_out, N1] to match PyTorch's NCHW-derived output."""
    rel_pos, grouped_feats, _nbr_mask = masked_query_and_group(
        query_xyz, support_xyz, query_mask, support_mask, support_features,
        radius=radius, nsample=nsample)
    # Fold eval-mode BatchNorm2d (default stats) into the conv weight.
    bn_scale = 1.0 / jnp.sqrt(1.0 + 1e-5)
    w_folded_t = (conv_weight * bn_scale).T                                # [Cfeat, Cout]
    out = pointwise_mlp_pallas(rel_pos, grouped_feats, w_folded_t)         # [B, N1, Cout]
    return jnp.transpose(out, (0, 2, 1))                                   # [B, Cout, N1]


# ------------------------------ reference ---------------------------------- #

def pointwise_mlp_reference(rel_pos, grouped_feats, w_folded_t):
    fi = grouped_feats[:, :, 0:1, :]
    df = grouped_feats - fi
    x = jnp.concatenate(
        [rel_pos, jnp.broadcast_to(fi, grouped_feats.shape), df], axis=-1)
    y = jnp.maximum(jnp.einsum("bnsf,fo->bnso", x, w_folded_t), 0.0)
    return jnp.max(y, axis=2)                                              # [B, N1, Cout]


# --------------------------------- main ------------------------------------ #

if __name__ == "__main__":
    B, N1, N2 = 2, 16, 32
    C_in, C_out = 4, 32
    radius, nsample = 0.5, 8
    C_feat = 3 + 2 * C_in   # 'dp_fi_df'

    key = jax.random.PRNGKey(0)
    k1, k2, k3, k4 = jax.random.split(key, 4)
    query_xyz = jax.random.uniform(k1, (B, N1, 3), dtype=jnp.float32)
    support_xyz = jax.random.uniform(k2, (B, N2, 3), dtype=jnp.float32)
    support_features = jax.random.normal(k3, (B, C_in, N2), dtype=jnp.float32)
    query_mask = jnp.ones((B, N1), dtype=jnp.float32).at[:, -2:].set(0.0)
    support_mask = jnp.ones((B, N2), dtype=jnp.float32).at[:, -4:].set(0.0)
    # Conv2d(C_feat, C_out, kernel_size=1, bias=False) weight, squeezed to [Cout, Cfeat]
    conv_weight = 0.1 * jax.random.normal(k4, (C_out, C_feat), dtype=jnp.float32)

    out = pointwise_mlp_forward(
        query_xyz, support_xyz, query_mask, support_mask, support_features,
        conv_weight, radius=radius, nsample=nsample)
    out = jax.block_until_ready(out)
    assert out.shape == (B, C_out, N1), out.shape

    # correctness check against a pure-JAX f32 reference of the kernel's hot path
    # (kernel uses bf16 matmul operands -> tolerance accounts for that).
    rel_pos, grouped_feats, _ = masked_query_and_group(
        query_xyz, support_xyz, query_mask, support_mask, support_features,
        radius=radius, nsample=nsample)
    w_folded_t = (conv_weight * (1.0 / jnp.sqrt(1.0 + 1e-5))).T
    ref = jnp.transpose(pointwise_mlp_reference(rel_pos, grouped_feats, w_folded_t),
                        (0, 2, 1))
    assert jnp.allclose(out, ref, atol=2e-2, rtol=2e-2), (
        float(jnp.max(jnp.abs(out - ref))))

    print("KERNEL_OK")
</pallas_src>

<mosaic_0001>
module attributes {stable_mosaic.version = 11 : i64} {
  func.func @_pointwise_mlp_kernel(%arg0: i32, %arg1: i32, %arg2: i32, %arg3: memref<1x16x8x128xbf16, #tpu.memory_space<vmem>>, %arg4: memref<1x16x4xf32, #tpu.memory_space<vmem>>, %arg5: memref<128x128xbf16, #tpu.memory_space<vmem>>, %arg6: memref<4x128xf32, #tpu.memory_space<vmem>>, %arg7: memref<1x16x128xf32, #tpu.memory_space<vmem>>, %arg8: memref<16x128xf32, #tpu.memory_space<vmem>>) attributes {dimension_semantics = [#tpu.dimension_semantics<parallel>, #tpu.dimension_semantics<parallel>, #tpu.dimension_semantics<arbitrary>], iteration_bounds = array<i64: 2, 1, 1>, scalar_prefetch = 0 : i64, scratch_operands = 1 : i64, tpu.core_type = #tpu.core_type<tc>, window_params = [{transform_indices = @transform_0, window_bounds = array<i64: 1, 16, 8, 128>}, {transform_indices = @transform_1, window_bounds = array<i64: 1, 16, 4>}, {pipeline_mode = #tpu.pipeline_mode<synchronous>, transform_indices = @transform_2, window_bounds = array<i64: 128, 128>}, {pipeline_mode = #tpu.pipeline_mode<synchronous>, transform_indices = @transform_3, window_bounds = array<i64: 4, 128>}, {transform_indices = @transform_4, window_bounds = array<i64: 1, 16, 128>}]} {
    %c0_i32 = arith.constant 0 : i32
    %0 = arith.cmpi eq, %arg2, %c0_i32 : i32
    %1 = arith.extui %0 : i1 to i32
    %c0_i32_0 = arith.constant 0 : i32
    %2 = arith.cmpi ne, %1, %c0_i32_0 : i32
    scf.if %2 {
      %cst_13 = arith.constant 0xFF800000 : f32
      %16 = vector.broadcast %cst_13 : f32 to vector<16x128xf32>
      %c0_14 = arith.constant 0 : index
      %c0_15 = arith.constant 0 : index
      %17 = vector.load %arg8[%c0_14, %c0_15] : memref<16x128xf32, #tpu.memory_space<vmem>>, vector<16x128xf32>
      tpu.vector_store %arg8[%c0_14, %c0_15], %16 {strides = array<i32>} : memref<16x128xf32, #tpu.memory_space<vmem>>, vector<16x128xf32>,
    } else {
    }
    %c0 = arith.constant 0 : index
    %c0_1 = arith.constant 0 : index
    %c0_2 = arith.constant 0 : index
    %c0_3 = arith.constant 0 : index
    %3 = vector.load %arg3[%c0, %c0_1, %c0_2, %c0_3] : memref<1x16x8x128xbf16, #tpu.memory_space<vmem>>, vector<1x16x8x128xbf16>
    %4 = vector.shape_cast %3 : vector<1x16x8x128xbf16> to vector<16x8x128xbf16>
    %5 = vector.shape_cast %4 : vector<16x8x128xbf16> to vector<128x128xbf16>
    %c0_4 = arith.constant 0 : index
    %c0_5 = arith.constant 0 : index
    %6 = vector.load %arg5[%c0_4, %c0_5] : memref<128x128xbf16, #tpu.memory_space<vmem>>, vector<128x128xbf16>
    %cst = arith.constant dense<0.000000e+00> : vector<128x128xf32>
    %7 = tpu.matmul %5, %6, %cst {dimension_numbers = #tpu.dot_dimension_numbers<[1], [0], [0], [1], [0, 0, 1, 1], [], []>} : vector<128x128xbf16>, vector<128x128xbf16>, vector<128x128xf32> -> vector<128x128xf32>
    %8 = vector.shape_cast %7 : vector<128x128xf32> to vector<16x8x128xf32>
    %c0_6 = arith.constant 0 : index
    %c0_7 = arith.constant 0 : index
    %9 = vector.load %arg8[%c0_6, %c0_7] : memref<16x128xf32, #tpu.memory_space<vmem>>, vector<16x128xf32>
    %cst_8 = arith.constant dense<0xFF800000> : vector<16x128xf32>
    %10 = vector.multi_reduction <maximumf>, %8, %cst_8 [1] : vector<16x8x128xf32> to vector<16x128xf32>
    %11 = arith.maximumf %9, %10 : vector<16x128xf32>
    %c0_9 = arith.constant 0 : index
    %c0_10 = arith.constant 0 : index
    %12 = vector.load %arg8[%c0_9, %c0_10] : memref<16x128xf32, #tpu.memory_space<vmem>>, vector<16x128xf32>
    tpu.vector_store %arg8[%c0_9, %c0_10], %11 {strides = array<i32>} : memref<16x128xf32, #tpu.memory_space<vmem>>, vector<16x128xf32>,
    %c0_i32_11 = arith.constant 0 : i32
    %13 = arith.cmpi eq, %arg2, %c0_i32_11 : i32
    %14 = arith.extui %13 : i1 to i32
    %c0_i32_12 = arith.constant 0 : i32
    %15 = arith.cmpi ne, %14, %c0_i32_12 : i32
    scf.if %15 {
      %c0_13 = arith.constant 0 : index
      %c0_14 = arith.constant 0 : index
      %c0_15 = arith.constant 0 : index
      %16 = vector.load %arg4[%c0_13, %c0_14, %c0_15] : memref<1x16x4xf32, #tpu.memory_space<vmem>>, vector<1x16x4xf32>
      %17 = vector.shape_cast %16 : vector<1x16x4xf32> to vector<16x4xf32>
      %c0_16 = arith.constant 0 : index
      %c0_17 = arith.constant 0 : index
      %18 = vector.load %arg6[%c0_16, %c0_17] : memref<4x128xf32, #tpu.memory_space<vmem>>, vector<4x128xf32>
      %cst_18 = arith.constant dense<0.000000e+00> : vector<16x128xf32>
      %19 = tpu.matmul %17, %18, %cst_18 {dimension_numbers = #tpu.dot_dimension_numbers<[1], [0], [0], [1], [0, 0, 1, 1], [], []>} : vector<16x4xf32>, vector<4x128xf32>, vector<16x128xf32> -> vector<16x128xf32>
      %c0_19 = arith.constant 0 : index
      %c0_20 = arith.constant 0 : index
      %20 = vector.load %arg8[%c0_19, %c0_20] : memref<16x128xf32, #tpu.memory_space<vmem>>, vector<16x128xf32>
      %21 = arith.addf %20, %19 : vector<16x128xf32>
      %cst_21 = arith.constant 0.000000e+00 : f32
      %22 = vector.broadcast %cst_21 : f32 to vector<16x128xf32>
      %23 = arith.maximumf %21, %22 : vector<16x128xf32>
      %c0_22 = arith.constant 0 : index
      %c0_23 = arith.constant 0 : index
      %c0_24 = arith.constant 0 : index
      %24 = vector.load %arg7[%c0_22, %c0_23, %c0_24] : memref<1x16x128xf32, #tpu.memory_space<vmem>>, vector<1x16x128xf32>
      %25 = vector.shape_cast %24 : vector<1x16x128xf32> to vector<16x128xf32>
      %26 = vector.shape_cast %23 : vector<16x128xf32> to vector<1x16x128xf32>
      tpu.vector_store %arg7[%c0_22, %c0_23, %c0_24], %26 {strides = array<i32>} : memref<1x16x128xf32, #tpu.memory_space<vmem>>, vector<1x16x128xf32>,
    } else {
    }
    return
  }
  func.func @transform_0(%arg0: i32, %arg1: i32, %arg2: i32) -> (i32, i32, i32, i32) {
    %c0_i32 = arith.constant 0 : i32
    %c0_i32_0 = arith.constant 0 : i32
    return %arg0, %arg1, %arg2, %c0_i32 : i32, i32, i32, i32
  }
  func.func @transform_1(%arg0: i32, %arg1: i32, %arg2: i32) -> (i32, i32, i32) {
    %c0_i32 = arith.constant 0 : i32
    %c0_i32_0 = arith.constant 0 : i32
    return %arg0, %arg1, %c0_i32 : i32, i32, i32
  }
  func.func @transform_2(%arg0: i32, %arg1: i32, %arg2: i32) -> (i32, i32) {
    %c0_i32 = arith.constant 0 : i32
    %c0_i32_0 = arith.constant 0 : i32
    %c0_i32_1 = arith.constant 0 : i32
    return %c0_i32, %c0_i32_0 : i32, i32
  }
  func.func @transform_3(%arg0: i32, %arg1: i32, %arg2: i32) -> (i32, i32) {
    %c0_i32 = arith.constant 0 : i32
    %c0_i32_0 = arith.constant 0 : i32
    %c0_i32_1 = arith.constant 0 : i32
    return %c0_i32, %c0_i32_0 : i32, i32
  }
  func.func @transform_4(%arg0: i32, %arg1: i32, %arg2: i32) -> (i32, i32, i32) {
    %c0_i32 = arith.constant 0 : i32
    %c0_i32_0 = arith.constant 0 : i32
    return %arg0, %arg1, %c0_i32 : i32, i32, i32
  }
}

</mosaic_0001>

<llo_original>
// kernel: tpu_custom_call.1
$region0: #{tpu_custom_call.1}
  #allocation0 [shape = 'u32[]', space=smem, size = 0x4, offset = 0x4, fixed_abs, tag = 'smem constant byte address 0x4 - core index']
  #allocation1 [shape = 'u32[144,128]{1,0:T(1,128)}', space=vmem, size = 0x12000, scoped, tag = 'internal scratch']
  #allocation2 [shape = 'f32[16,128]{1,0:T(8,128)}', space=vmem, size = 0x2000, scoped, tag = 'scratch operand']
  %s0 = inlined_call_operand.hbm [shape: bf16[2,16,8,128], index: 0, kind: input, shape index: {}]
  %s1 = inlined_call_operand.vmem [shape: f32[2,16,4], index: 1, kind: input, shape index: {}]
  %s2 = inlined_call_operand.hbm [shape: bf16[128,128], index: 2, kind: input, shape index: {}]
  %s3 = inlined_call_operand.vmem [shape: f32[4,128], index: 3, kind: input, shape index: {}]
  %s4 = inlined_call_operand.hbm [shape: f32[2,16,128], index: 4, kind: output, shape index: {}]
  %s5 = sld [smem:[#allocation0]]
  $region65: #{tpu_custom_call.1} parent=0
    _
  %s7 = ssub.s32 1, %s5
  %s8 = scalar_select 0, %s7, %s5
  $region1: #{tpu_custom_call.1} parent=0
    #allocation3 [shape = 'u8[65536]{0}', space=vmem, size = 0x10000, scoped, tag = 'input window, operand 0']
    #allocation4 [shape = 's32[2]{0}', space=sflag, size = 0x8, scoped, tag = 'scoped memory for tpu_custom_call.1']
    #allocation5 [shape = 's32[2]{0}', space=sflag, size = 0x8, scoped, tag = 'scoped memory for tpu_custom_call.1']
    #allocation6 [shape = 'u8[32768]{0}', space=vmem, size = 0x8000, scoped, tag = 'input window, operand 2, single buffered']
    #allocation7 [shape = 's32[1]{0}', space=sflag, size = 0x4, scoped, tag = 'scoped memory for tpu_custom_call.1']
    #allocation8 [shape = 'u8[16384]{0}', space=vmem, size = 0x4000, scoped, tag = 'output window, operand 0']
    %9 = vsyncpa [#allocation4], 0
    %s10 = scalar_lea.sflag [#allocation4], 1
    %11 = vsyncpa %s10, 0
    %12 = vsyncpa [#allocation7], 0
    %13 = vsyncpa [#allocation5], 0
    %s14 = scalar_lea.sflag [#allocation5], 1
    %15 = vsyncpa %s14, 0
    loop: start=0, step=1, limit=4
    $region2: #{tpu_custom_call.1} parent=1 // loop_pre_header
      _
    $region3: #{tpu_custom_call.1} parent=1 // loop_header
      %s17 = sphi 0, %s21
      %p18 = scmp.ge.s32.totalorder %s17, 4
      %s24 = sphi 0, %s43
      %s25 = sphi 0, %s39
      %s26 = sphi 0, %s35
      %s27 = sphi 0, %s24
      %s28 = sphi 0, %s25
      %s29 = sphi 0, %s26
      %s30 = sphi 0, %s27
      %s31 = sphi 0, %s28
      %s32 = sphi 0, %s29
      %s50 = sphi 0, %s52
      %s53 = sphi 0, %s50
      %s54 = sphi 0, %s53
      %s70 = sphi 0, %s54
      %s78 = sphi 0, %s80
      %s81 = sphi 0, %s78
      %s82 = sphi 0, %s81
      %s98 = sphi 0, %s82
      %s102 = sphi 0, %s102
      %s104 = sphi 0, %s102
      %s105 = sphi 0, %s104
      %s119 = sphi 0, %s105
      %s123 = sphi 0, %s123
      %s125 = sphi 0, %s123
      %s126 = sphi 0, %s125
      %s140 = sphi 0, %s126
      %s148 = sphi 0, %s150
      %s151 = sphi 0, %s148
      %s152 = sphi 0, %s151
      %s168 = sphi 0, %s152
    $region4: #{tpu_custom_call.1} parent=1 // loop_header_branch
      %20 = sbr.rel (%p18) target = $region8
    $region5: #{tpu_custom_call.1} parent=1 // loop_body
      %s22 = ssub.s32 %s17, 1
      %s23 = ssub.s32 %s17, 2
      %s33 = sadd.s32 1, %s26
      %p34 = scmp.ge.s32.totalorder %s33, 1
      %s35 = scalar_select %p34, 0, %s33
      %s36 = sadd.s32 1, %s25
      %s37 = scalar_select %p34, %s36, %s25
      %p38 = scmp.ge.s32.totalorder %s37, 1
      %s39 = scalar_select %p38, 0, %s37
      %s40 = sadd.s32 1, %s24
      %s41 = scalar_select %p38, %s40, %s24
      %p42 = scmp.ge.s32.totalorder %s41, 2
      %s43 = scalar_select %p42, 0, %s41
      %s44 = ssub.s32 %s24, %s43
      %s45 = ssub.s32 %s25, %s39
      %s46 = sor.u32 %s44, %s45
      %s47 = ssub.s32 %s26, %s35
      %s48 = sor.u32 %s46, %s47
      %p49 = scmp.eq.s32.totalorder %s48, 0
      %s51 = sadd.s32 %s50, 1
      %s52 = scalar_select %p49, %s50, %s51
      %p55 = pneg %p49
      %p56 = scmp.eq.s32.totalorder %s17, 1
      %p57 = por %p55, %p56
      %p58 = scmp.ne.s32.totalorder %s50, %s53
      %p59 = scmp.eq.s32.totalorder %s17, 0
      %p60 = por %p58, %p59
      %p61 = scmp.ne.s32.totalorder %s50, %s53
      %p62 = scmp.eq.s32.totalorder %s22, 1
      %p63 = por %p61, %p62
      %p64 = scmp.ne.s32.totalorder %s53, %s54
      %p65 = scmp.eq.s32.totalorder %s22, 0
      %p66 = por %p64, %p65
      %p67 = scmp.ne.s32.totalorder %s53, %s54
      %p68 = scmp.eq.s32.totalorder %s23, 1
      %p69 = por %p67, %p68
      %p71 = scmp.ne.s32.totalorder %s54, %s70
      %p72 = scmp.eq.s32.totalorder %s23, 0
      %p73 = por %p71, %p72
      %s74 = ssub.s32 %s24, %s43
      %s75 = ssub.s32 %s25, %s39
      %s76 = sor.u32 %s74, %s75
      %p77 = scmp.eq.s32.totalorder %s76, 0
      %s79 = sadd.s32 %s78, 1
      %s80 = scalar_select %p77, %s78, %s79
      %p83 = pneg %p77
      %p84 = scmp.eq.s32.totalorder %s17, 1
      %p85 = por %p83, %p84
      %p86 = scmp.ne.s32.totalorder %s78, %s81
      %p87 = scmp.eq.s32.totalorder %s17, 0
      %p88 = por %p86, %p87
      %p89 = scmp.ne.s32.totalorder %s78, %s81
      %p90 = scmp.eq.s32.totalorder %s22, 1
      %p91 = por %p89, %p90
      %p92 = scmp.ne.s32.totalorder %s81, %s82
      %p93 = scmp.eq.s32.totalorder %s22, 0
      %p94 = por %p92, %p93
      %p95 = scmp.ne.s32.totalorder %s81, %s82
      %p96 = scmp.eq.s32.totalorder %s23, 1
      %p97 = por %p95, %p96
      %p99 = scmp.ne.s32.totalorder %s82, %s98
      %p100 = scmp.eq.s32.totalorder %s23, 0
      %p101 = por %p99, %p100
      %s103 = sadd.s32 %s102, 1
      %p106 = scmp.eq.s32.totalorder %s17, 1
      %p107 = scmp.ne.s32.totalorder %s102, %s104
      %p108 = scmp.eq.s32.totalorder %s17, 0
      %p109 = por %p107, %p108
      %p110 = scmp.ne.s32.totalorder %s102, %s104
      %p111 = scmp.eq.s32.totalorder %s22, 1
      %p112 = por %p110, %p111
      %p113 = scmp.ne.s32.totalorder %s104, %s105
      %p114 = scmp.eq.s32.totalorder %s22, 0
      %p115 = por %p113, %p114
      %p116 = scmp.ne.s32.totalorder %s104, %s105
      %p117 = scmp.eq.s32.totalorder %s23, 1
      %p118 = por %p116, %p117
      %p120 = scmp.ne.s32.totalorder %s105, %s119
      %p121 = scmp.eq.s32.totalorder %s23, 0
      %p122 = por %p120, %p121
      %s124 = sadd.s32 %s123, 1
      %p127 = scmp.eq.s32.totalorder %s17, 1
      %p128 = scmp.ne.s32.totalorder %s123, %s125
      %p129 = scmp.eq.s32.totalorder %s17, 0
      %p130 = por %p128, %p129
      %p131 = scmp.ne.s32.totalorder %s123, %s125
      %p132 = scmp.eq.s32.totalorder %s22, 1
      %p133 = por %p131, %p132
      %p134 = scmp.ne.s32.totalorder %s125, %s126
      %p135 = scmp.eq.s32.totalorder %s22, 0
      %p136 = por %p134, %p135
      %p137 = scmp.ne.s32.totalorder %s125, %s126
      %p138 = scmp.eq.s32.totalorder %s23, 1
      %p139 = por %p137, %p138
      %p141 = scmp.ne.s32.totalorder %s126, %s140
      %p142 = scmp.eq.s32.totalorder %s23, 0
      %p143 = por %p141, %p142
      %s144 = ssub.s32 %s24, %s43
      %s145 = ssub.s32 %s25, %s39
      %s146 = sor.u32 %s144, %s145
      %p147 = scmp.eq.s32.totalorder %s146, 0
      %s149 = sadd.s32 %s148, 1
      %s150 = scalar_select %p147, %s148, %s149
      %p153 = pneg %p147
      %p154 = scmp.eq.s32.totalorder %s17, 1
      %p155 = por %p153, %p154
      %p156 = scmp.ne.s32.totalorder %s148, %s151
      %p157 = scmp.eq.s32.totalorder %s17, 0
      %p158 = por %p156, %p157
      %p159 = scmp.ne.s32.totalorder %s148, %s151
      %p160 = scmp.eq.s32.totalorder %s22, 1
      %p161 = por %p159, %p160
      %p162 = scmp.ne.s32.totalorder %s151, %s152
      %p163 = scmp.eq.s32.totalorder %s22, 0
      %p164 = por %p162, %p163
      %p165 = scmp.ne.s32.totalorder %s151, %s152
      %p166 = scmp.eq.s32.totalorder %s23, 1
      %p167 = por %p165, %p166
      %p169 = scmp.ne.s32.totalorder %s152, %s168
      %p170 = scmp.eq.s32.totalorder %s23, 0
      %p171 = por %p169, %p170
      %p172 = scmp.le.s32.totalorder 1, %s17
      %p173 = scmp.lt.s32.totalorder %s17, 3
      %p174 = pnand %p172, %p173
      %p175 = pneg %p174
      // Predicated region
      $region9: #{tpu_custom_call.1} parent=5 // pred_check
        _
      $region10: #{tpu_custom_call.1} parent=5 // pred_check_branch
        %177 = sbr.rel (%p174) target = $region12
      $region11: #{tpu_custom_call.1} parent=5 // pred_region
        %s178 = ssub.s32 %s17, 1
        // Predicated region
        $region13: #{tpu_custom_call.1} parent=11 // pred_check
          %p179 = pneg %p115
        $region14: #{tpu_custom_call.1} parent=11 // pred_check_branch
          %181 = sbr.rel (%p179) target = $region16
        $region15: #{tpu_custom_call.1} parent=11 // pred_region
          %s183 = ssub.s32 1024, 1024
          %184 = vsyncadd [#allocation7], %s183
          %s185 = sshll.u32 [#allocation6], 4
          %s186 = int_to_ptr.vmem [resolvable:$true] %s185
          %191 = dma.hbm_to_vmem [thread:$0]  %s2, 1024, %s186, [#allocation7], 64, 64, 4
        $region16: #{tpu_custom_call.1} parent=11 // pred_fallthru
          _
        // Predicated region
        $region17: #{tpu_custom_call.1} parent=11 // pred_check
          %p192 = pneg %p136
        $region18: #{tpu_custom_call.1} parent=11 // pred_check_branch
          %194 = sbr.rel (%p192) target = $region20
        $region19: #{tpu_custom_call.1} parent=11 // pred_region
          _
        $region20: #{tpu_custom_call.1} parent=11 // pred_fallthru
          _
      $region12: #{tpu_custom_call.1} parent=5 // pred_fallthru
        _
      %p195 = scmp.lt.s32.totalorder %s17, 2
      // Predicated region
      $region21: #{tpu_custom_call.1} parent=5 // pred_check
        %p196 = pneg %p195
      $region22: #{tpu_custom_call.1} parent=5 // pred_check_branch
        %198 = sbr.rel (%p196) target = $region24
      $region23: #{tpu_custom_call.1} parent=5 // pred_region
        // Predicated region
        $region25: #{tpu_custom_call.1} parent=23 // pred_check
          %p199 = pneg %p60
        $region26: #{tpu_custom_call.1} parent=23 // pred_check_branch
          %201 = sbr.rel (%p199) target = $region28
        $region27: #{tpu_custom_call.1} parent=23 // pred_region
          %s202 = sand.u32 %s50, 1
          %s203 = scalar_lea.sflag [#allocation4], %s202
          %s204 = sand.u32 %s50, 1
          %s205 = smul.addr %s204, 64
          %s206 = scalar_lea.vmem [#allocation3], %s205
          %s207 = smul.u32 16, %s25
          %s209 = ssub.s32 1024, 1024
          %210 = vsyncadd %s203, %s209
          %s211 = sadd.s32 %s26, %s207
          %s212 = smul.addr %s24, 16
          %s213 = sadd.s32 %s211, %s212
          %s214 = smul.addr %s213, 64
          %s215 = scalar_lea.hbm %s0, %s214
          %s216 = sshll.u32 %s206, 4
          %s217 = int_to_ptr.vmem [resolvable:$true] %s216
          %222 = dma.hbm_to_vmem [thread:$0]  %s215, 1024, %s217, %s203, 64, 64, 4
        $region28: #{tpu_custom_call.1} parent=23 // pred_fallthru
          _
        // Predicated region
        $region29: #{tpu_custom_call.1} parent=23 // pred_check
          %p223 = pneg %p88
        $region30: #{tpu_custom_call.1} parent=23 // pred_check_branch
          %225 = sbr.rel (%p223) target = $region32
        $region31: #{tpu_custom_call.1} parent=23 // pred_region
          %s226 = smul.u32 2, %s25
          %p227 = scmp.lt.s32.totalorder %s24, 1
          %s228 = scalar_select %p227, %s24, 1
          %p229 = scmp.lt.s32.totalorder %s226, 1
          %s230 = scalar_select %p229, %s226, 1
          %s231 = smul.addr %s228, 2
          %s232 = sadd.s32 %s230, %s231
          %s233 = smul.addr %s232, 8
          %s234 = scalar_lea.vmem %s1, %s233
          %s235 = smul.u32 2, %s25
        $region32: #{tpu_custom_call.1} parent=23 // pred_fallthru
          _
      $region24: #{tpu_custom_call.1} parent=5 // pred_fallthru
        _
      %p236 = scmp.le.s32.totalorder 1, %s17
      %p237 = scmp.lt.s32.totalorder %s17, 3
      %p238 = pnand %p236, %p237
      %p239 = pneg %p238
      // Predicated region
      $region33: #{tpu_custom_call.1} parent=5 // pred_check
        _
      $region34: #{tpu_custom_call.1} parent=5 // pred_check_branch
        %241 = sbr.rel (%p238) target = $region36
      $region35: #{tpu_custom_call.1} parent=5 // pred_region
        %s242 = ssub.s32 %s17, 1
        %s243 = sand.u32 %s53, 1
        %s244 = scalar_lea.sflag [#allocation4], %s243
        %s245 = sand.u32 %s53, 1
        %s246 = smul.addr %s245, 64
        %s247 = scalar_lea.vmem [#allocation3], %s246
        // Predicated region
        $region37: #{tpu_custom_call.1} parent=35 // pred_check
          %p248 = pneg %p66
        $region38: #{tpu_custom_call.1} parent=35 // pred_check_branch
          %250 = sbr.rel (%p248) target = $region40
        $region39: #{tpu_custom_call.1} parent=35 // pred_region
          %251 = dma.done %s244, 1024
        $region40: #{tpu_custom_call.1} parent=35 // pred_fallthru
          _
        // Predicated region
        $region41: #{tpu_custom_call.1} parent=35 // pred_check
          %p252 = pneg %p115
        $region42: #{tpu_custom_call.1} parent=35 // pred_check_branch
          %254 = sbr.rel (%p252) target = $region44
        $region43: #{tpu_custom_call.1} parent=35 // pred_region
          %255 = dma.done [#allocation7], 1024
        $region44: #{tpu_custom_call.1} parent=35 // pred_fallthru
          _
        %s256 = sand.u32 %s53, 1
        %s257 = scalar_lea.sflag [#allocation4], %s256
        %s258 = sand.u32 %s53, 1
        %s259 = smul.addr %s258, 64
        %s260 = scalar_lea.vmem [#allocation3], %s259
        %p261 = pneg %p66
        %p262 = pneg %p63
        %s263 = smul.u32 2, %s28
        %p264 = scmp.lt.s32.totalorder %s27, 1
        %s265 = scalar_select %p264, %s27, 1
        %p266 = scmp.lt.s32.totalorder %s263, 1
        %s267 = scalar_select %p266, %s263, 1
        %s268 = smul.addr %s265, 2
        %s269 = sadd.s32 %s267, %s268
        %s270 = smul.addr %s269, 8
        %s271 = scalar_lea.vmem %s1, %s270
        %p272 = pneg %p94
        %p273 = pneg %p91
        %p274 = pneg %p115
        %p275 = pneg %p112
        %p276 = pneg %p136
        %p277 = pneg %p133
        %p278 = pneg %p164
        %p279 = pneg %p161
        %s280 = sand.u32 %s151, 1
        %s281 = scalar_lea.sflag [#allocation5], %s280
        %s282 = sand.u32 %s151, 1
        %s283 = smul.addr %s282, 16
        %s284 = scalar_lea.vmem [#allocation8], %s283
        %s285 = smul.u32 16, %s28
        %s286 = smul.u32 2, %s28
        %p287 = scmp.lt.s32.totalorder %s27, 1
        %s288 = scalar_select %p287, %s27, 1
        %p289 = scmp.lt.s32.totalorder %s286, 1
        %s290 = scalar_select %p289, %s286, 1
        %s291 = smul.addr %s288, 2
        %s292 = sadd.s32 %s290, %s291
        %s293 = smul.addr %s292, 8
        %s294 = scalar_lea.vmem %s1, %s293
        %s295 = smul.u32 2, %s28
        %s296 = smul.u32 2, %s28
        %p298 = scmp.eq.s32.totalorder %s29, 0
        // Predicated region
        $region45: #{tpu_custom_call.1} parent=35 // pred_check
          %p299 = pneg %p298
        $region46: #{tpu_custom_call.1} parent=35 // pred_check_branch
          %301 = sbr.rel (%p299) target = $region48
        $region47: #{tpu_custom_call.1} parent=35 // pred_region
          %302 = vst [vmem:[#allocation2] sm:$0xff] -inf
          %303 = vst [vmem:[#allocation2 + $0x8] sm:$0xff] -inf
        $region48: #{tpu_custom_call.1} parent=35 // pred_fallthru
          _
        %v304 = vld [vmem:[%s247] sm:$0xf]
        %v305 = vld [vmem:[%s247 + $0x4] sm:$0xf]
        %v306 = vld [vmem:[%s247 + $0x8] sm:$0xf]
        %v307 = vld [vmem:[%s247 + $0xc] sm:$0xf]
        %v308 = vld [vmem:[%s247 + $0x10] sm:$0xf]
        %v309 = vld [vmem:[%s247 + $0x14] sm:$0xf]
        %v310 = vld [vmem:[%s247 + $0x18] sm:$0xf]
        %v311 = vld [vmem:[%s247 + $0x1c] sm:$0xf]
        %v312 = vld [vmem:[%s247 + $0x20] sm:$0xf]
        %v313 = vld [vmem:[%s247 + $0x24] sm:$0xf]
        %v314 = vld [vmem:[%s247 + $0x28] sm:$0xf]
        %v315 = vld [vmem:[%s247 + $0x2c] sm:$0xf]
        %v316 = vld [vmem:[%s247 + $0x30] sm:$0xf]
        %v317 = vld [vmem:[%s247 + $0x34] sm:$0xf]
        %v318 = vld [vmem:[%s247 + $0x38] sm:$0xf]
        %v319 = vld [vmem:[%s247 + $0x3c] sm:$0xf]
        %v320 = vld [vmem:[#allocation6] sm:$0xf]
        %v321 = vld [vmem:[#allocation6 + $0x4] sm:$0xf]
        %v322 = vld [vmem:[#allocation6 + $0x8] sm:$0xf]
        %v323 = vld [vmem:[#allocation6 + $0xc] sm:$0xf]
        %v324 = vld [vmem:[#allocation6 + $0x10] sm:$0xf]
        %v325 = vld [vmem:[#allocation6 + $0x14] sm:$0xf]
        %v326 = vld [vmem:[#allocation6 + $0x18] sm:$0xf]
        %v327 = vld [vmem:[#allocation6 + $0x1c] sm:$0xf]
        %v328 = vld [vmem:[#allocation6 + $0x20] sm:$0xf]
        %v329 = vld [vmem:[#allocation6 + $0x24] sm:$0xf]
        %v330 = vld [vmem:[#allocation6 + $0x28] sm:$0xf]
        %v331 = vld [vmem:[#allocation6 + $0x2c] sm:$0xf]
        %v332 = vld [vmem:[#allocation6 + $0x30] sm:$0xf]
        %v333 = vld [vmem:[#allocation6 + $0x34] sm:$0xf]
        %v334 = vld [vmem:[#allocation6 + $0x38] sm:$0xf]
        %v335 = vld [vmem:[#allocation6 + $0x3c] sm:$0xf]
        %v352 = vunpack.c.l.b16 %v304
        %v353 = vunpack.c.l.b16 %v305
        %v354 = vunpack.c.l.b16 %v306
        %v355 = vunpack.c.l.b16 %v307
        %v356 = vunpack.c.l.b16 %v308
        %v357 = vunpack.c.l.b16 %v309
        %v358 = vunpack.c.l.b16 %v310
        %v359 = vunpack.c.l.b16 %v311
        %v360 = vunpack.c.l.b16 %v312
        %v361 = vunpack.c.l.b16 %v313
        %v362 = vunpack.c.l.b16 %v314
        %v363 = vunpack.c.l.b16 %v315
        %v364 = vunpack.c.l.b16 %v316
        %v365 = vunpack.c.l.b16 %v317
        %v366 = vunpack.c.l.b16 %v318
        %v367 = vunpack.c.l.b16 %v319
        %v368 = vpack.c.b16 %v353, %v352
        %v369 = vpack.c.b16 %v355, %v354
        %v370 = vpack.c.b16 %v357, %v356
        %v371 = vpack.c.b16 %v359, %v358
        %v372 = vpack.c.b16 %v361, %v360
        %v373 = vpack.c.b16 %v363, %v362
        %v374 = vpack.c.b16 %v365, %v364
        %v375 = vpack.c.b16 %v367, %v366
        %v400 = vunpack.c.l.b16 %v320
        %v401 = vunpack.c.l.b16 %v321
        %v402 = vunpack.c.l.b16 %v322
        %v403 = vunpack.c.l.b16 %v323
        %v404 = vunpack.c.l.b16 %v324
        %v405 = vunpack.c.l.b16 %v325
        %v406 = vunpack.c.l.b16 %v326
        %v407 = vunpack.c.l.b16 %v327
        %v408 = vunpack.c.l.b16 %v328
        %v409 = vunpack.c.l.b16 %v329
        %v410 = vunpack.c.l.b16 %v330
        %v411 = vunpack.c.l.b16 %v331
        %v412 = vunpack.c.l.b16 %v332
        %v413 = vunpack.c.l.b16 %v333
        %v414 = vunpack.c.l.b16 %v334
        %v415 = vunpack.c.l.b16 %v335
        %v416 = vpack.c.b16 %v401, %v400
        %v417 = vpack.c.b16 %v403, %v402
        %v418 = vpack.c.b16 %v405, %v404
        %v419 = vpack.c.b16 %v407, %v406
        %v420 = vpack.c.b16 %v409, %v408
        %v421 = vpack.c.b16 %v411, %v410
        %v422 = vpack.c.b16 %v413, %v412
        %v423 = vpack.c.b16 %v415, %v414
        %432 = vmatprep.subr.bf16.mxu0 0
        %433 = vmatpush1.bf16.msra.mxu0 %v416
        %434 = vmatprep.subr.bf16.mxu0 0
        %435 = vmatpush1.bf16.msra.mxu0 %v417
        %436 = vmatprep.subr.bf16.mxu0 0
        %437 = vmatpush1.bf16.msra.mxu0 %v418
        %438 = vmatprep.subr.bf16.mxu0 0
        %439 = vmatpush1.bf16.msra.mxu0 %v419
        %440 = vmatprep.subr.bf16.mxu0 0
        %441 = vmatpush1.bf16.msra.mxu0 %v420
        %442 = vmatprep.subr.bf16.mxu0 0
        %443 = vmatpush1.bf16.msra.mxu0 %v421
        %444 = vmatprep.subr.bf16.mxu0 0
        %445 = vmatpush1.bf16.msra.mxu0 %v422
        %446 = vmatprep.subr.bf16.mxu0 0
        %447 = vmatpush1.bf16.msra.mxu0 %v423
        %448 = vmatprep.subr.bf16.mxu0 0
        %449 = vmatpush1.bf16.msra.mxu0 0
        %450 = vmatprep.subr.bf16.mxu0 0
        %451 = vmatpush1.bf16.msra.mxu0 0
        %452 = vmatprep.subr.bf16.mxu0 0
        %453 = vmatpush1.bf16.msra.mxu0 0
        %454 = vmatprep.subr.bf16.mxu0 0
        %455 = vmatpush1.bf16.msra.mxu0 0
        %456 = vmatprep.subr.bf16.mxu0 0
        %457 = vmatpush1.bf16.msra.mxu0 0
        %458 = vmatprep.subr.bf16.mxu0 0
        %459 = vmatpush1.bf16.msra.mxu0 0
        %460 = vmatprep.subr.bf16.mxu0 0
        %461 = vmatpush1.bf16.msra.mxu0 0
        %462 = vmatprep.subr.bf16.mxu0 0
        %463 = vmatpush1.bf16.msra.mxu0 0
        %464 = vmatprep.mubr.bf16.mxu0 0
        %465 = vmatmul.mubr.bf16.gmra.mrb[0].mxu0 %v368
        %v466 = vpop.f32.mrb[0].mxu0
        %v467 = vadd.f32 0.0, %v466
        %v468 = vpop.f32.mrb[0].mxu0
        %v469 = vpop.f32.mrb[0].mxu0
        %v470 = vadd.f32 0.0, %v469
        %v471 = vpop.f32.mrb[0].mxu0
        %472 = vmatprep.mubr.bf16.mxu0 0
        %473 = vmatmul.mubr.bf16.gmra.mrb[0].mxu0 %v369
        %v474 = vpop.f32.mrb[0].mxu0
        %v475 = vadd.f32 0.0, %v474
        %v476 = vpop.f32.mrb[0].mxu0
        %v477 = vpop.f32.mrb[0].mxu0
        %v478 = vadd.f32 0.0, %v477
        %v479 = vpop.f32.mrb[0].mxu0
        %480 = vmatprep.mubr.bf16.mxu0 0
        %481 = vmatmul.mubr.bf16.gmra.mrb[0].mxu0 %v370
        %v482 = vpop.f32.mrb[0].mxu0
        %v483 = vadd.f32 0.0, %v482
        %v484 = vpop.f32.mrb[0].mxu0
        %v485 = vpop.f32.mrb[0].mxu0
        %v486 = vadd.f32 0.0, %v485
        %v487 = vpop.f32.mrb[0].mxu0
        %488 = vmatprep.mubr.bf16.mxu0 0
        %489 = vmatmul.mubr.bf16.gmra.mrb[0].mxu0 %v371
        %v490 = vpop.f32.mrb[0].mxu0
        %v491 = vadd.f32 0.0, %v490
        %v492 = vpop.f32.mrb[0].mxu0
        %v493 = vpop.f32.mrb[0].mxu0
        %v494 = vadd.f32 0.0, %v493
        %v495 = vpop.f32.mrb[0].mxu0
        %496 = vmatprep.mubr.bf16.mxu0 0
        %497 = vmatmul.mubr.bf16.gmra.mrb[0].mxu0 %v372
        %v498 = vpop.f32.mrb[0].mxu0
        %v499 = vadd.f32 0.0, %v498
        %v500 = vpop.f32.mrb[0].mxu0
        %v501 = vpop.f32.mrb[0].mxu0
        %v502 = vadd.f32 0.0, %v501
        %v503 = vpop.f32.mrb[0].mxu0
        %504 = vmatprep.mubr.bf16.mxu0 0
        %505 = vmatmul.mubr.bf16.gmra.mrb[0].mxu0 %v373
        %v506 = vpop.f32.mrb[0].mxu0
        %v507 = vadd.f32 0.0, %v506
        %v508 = vpop.f32.mrb[0].mxu0
        %v509 = vpop.f32.mrb[0].mxu0
        %v510 = vadd.f32 0.0, %v509
        %v511 = vpop.f32.mrb[0].mxu0
        %512 = vmatprep.mubr.bf16.mxu0 0
        %513 = vmatmul.mubr.bf16.gmra.mrb[0].mxu0 %v374
        %v514 = vpop.f32.mrb[0].mxu0
        %v515 = vadd.f32 0.0, %v514
        %v516 = vpop.f32.mrb[0].mxu0
        %v517 = vpop.f32.mrb[0].mxu0
        %v518 = vadd.f32 0.0, %v517
        %v519 = vpop.f32.mrb[0].mxu0
        %520 = vmatprep.mubr.bf16.mxu0 0
        %521 = vmatmul.mubr.bf16.gmra.mrb[0].mxu0 %v375
        %v522 = vpop.f32.mrb[0].mxu0
        %v523 = vadd.f32 0.0, %v522
        %v524 = vpop.f32.mrb[0].mxu0
        %v525 = vpop.f32.mrb[0].mxu0
        %v526 = vadd.f32 0.0, %v525
        %v527 = vpop.f32.mrb[0].mxu0
        %528 = vdwg.mxu0
        %v529 = vld [vmem:[#allocation2] sm:$0xff]
        %v530 = vld [vmem:[#allocation2 + $0x8] sm:$0xff]
        %v531 = vrot.slane %v467, 4
        %v532 = vmax.f32 %v467, %v531
        %v533 = vrot.slane %v532, 2
        %v534 = vmax.f32 %v532, %v533
        %v535 = vrot.slane %v534, 1
        %v536 = vmax.f32 %v534, %v535
        %v537 = vrot.slane %v470, 4
        %v538 = vmax.f32 %v470, %v537
        %v539 = vrot.slane %v538, 2
        %v540 = vmax.f32 %v538, %v539
        %v541 = vrot.slane %v540, 1
        %v542 = vmax.f32 %v540, %v541
        %v543 = vrot.slane %v475, 4
        %v544 = vmax.f32 %v475, %v543
        %v545 = vrot.slane %v544, 2
        %v546 = vmax.f32 %v544, %v545
        %v547 = vrot.slane %v546, 1
        %v548 = vmax.f32 %v546, %v547
        %v549 = vrot.slane %v478, 4
        %v550 = vmax.f32 %v478, %v549
        %v551 = vrot.slane %v550, 2
        %v552 = vmax.f32 %v550, %v551
        %v553 = vrot.slane %v552, 1
        %v554 = vmax.f32 %v552, %v553
        %v555 = vrot.slane %v483, 4
        %v556 = vmax.f32 %v483, %v555
        %v557 = vrot.slane %v556, 2
        %v558 = vmax.f32 %v556, %v557
        %v559 = vrot.slane %v558, 1
        %v560 = vmax.f32 %v558, %v559
        %v561 = vrot.slane %v486, 4
        %v562 = vmax.f32 %v486, %v561
        %v563 = vrot.slane %v562, 2
        %v564 = vmax.f32 %v562, %v563
        %v565 = vrot.slane %v564, 1
        %v566 = vmax.f32 %v564, %v565
        %v567 = vrot.slane %v491, 4
        %v568 = vmax.f32 %v491, %v567
        %v569 = vrot.slane %v568, 2
        %v570 = vmax.f32 %v568, %v569
        %v571 = vrot.slane %v570, 1
        %v572 = vmax.f32 %v570, %v571
        %v573 = vrot.slane %v494, 4
        %v574 = vmax.f32 %v494, %v573
        %v575 = vrot.slane %v574, 2
        %v576 = vmax.f32 %v574, %v575
        %v577 = vrot.slane %v576, 1
        %v578 = vmax.f32 %v576, %v577
        %v579 = vrot.slane %v499, 4
        %v580 = vmax.f32 %v499, %v579
        %v581 = vrot.slane %v580, 2
        %v582 = vmax.f32 %v580, %v581
        %v583 = vrot.slane %v582, 1
        %v584 = vmax.f32 %v582, %v583
        %v585 = vrot.slane %v502, 4
        %v586 = vmax.f32 %v502, %v585
        %v587 = vrot.slane %v586, 2
        %v588 = vmax.f32 %v586, %v587
        %v589 = vrot.slane %v588, 1
        %v590 = vmax.f32 %v588, %v589
        %v591 = vrot.slane %v507, 4
        %v592 = vmax.f32 %v507, %v591
        %v593 = vrot.slane %v592, 2
        %v594 = vmax.f32 %v592, %v593
        %v595 = vrot.slane %v594, 1
        %v596 = vmax.f32 %v594, %v595
        %v597 = vrot.slane %v510, 4
        %v598 = vmax.f32 %v510, %v597
        %v599 = vrot.slane %v598, 2
        %v600 = vmax.f32 %v598, %v599
        %v601 = vrot.slane %v600, 1
        %v602 = vmax.f32 %v600, %v601
        %v603 = vrot.slane %v515, 4
        %v604 = vmax.f32 %v515, %v603
        %v605 = vrot.slane %v604, 2
        %v606 = vmax.f32 %v604, %v605
        %v607 = vrot.slane %v606, 1
        %v608 = vmax.f32 %v606, %v607
        %v609 = vrot.slane %v518, 4
        %v610 = vmax.f32 %v518, %v609
        %v611 = vrot.slane %v610, 2
        %v612 = vmax.f32 %v610, %v611
        %v613 = vrot.slane %v612, 1
        %v614 = vmax.f32 %v612, %v613
        %v615 = vrot.slane %v523, 4
        %v616 = vmax.f32 %v523, %v615
        %v617 = vrot.slane %v616, 2
        %v618 = vmax.f32 %v616, %v617
        %v619 = vrot.slane %v618, 1
        %v620 = vmax.f32 %v618, %v619
        %v621 = vrot.slane %v526, 4
        %v622 = vmax.f32 %v526, %v621
        %v623 = vrot.slane %v622, 2
        %v624 = vmax.f32 %v622, %v623
        %v625 = vrot.slane %v624, 1
        %v626 = vmax.f32 %v624, %v625
        %vm643 = vcmask 1041409
        %v644 = vsel %vm643, %v542, %v536
        %vm645 = vcmask 1042434
        %v646 = vsel %vm645, %v548, %v644
        %vm647 = vcmask 1043459
        %v648 = vsel %vm647, %v554, %v646
        %vm649 = vcmask 1044484
        %v650 = vsel %vm649, %v560, %v648
        %vm651 = vcmask 1045509
        %v652 = vsel %vm651, %v566, %v650
        %vm653 = vcmask 1046534
        %v654 = vsel %vm653, %v572, %v652
        %vm655 = vcmask 1047559
        %v656 = vsel %vm655, %v578, %v654
        %v657 = vsel %vm643, %v590, %v584
        %v658 = vsel %vm645, %v596, %v657
        %v659 = vsel %vm647, %v602, %v658
        %v660 = vsel %vm649, %v608, %v659
        %v661 = vsel %vm651, %v614, %v660
        %v662 = vsel %vm653, %v620, %v661
        %v663 = vsel %vm655, %v626, %v662
        %v666 = vmax.f32 %v529, %v656
        %v667 = vmax.f32 %v530, %v663
        %668 = vst [vmem:[#allocation2] sm:$0xff] %v666
        %669 = vst [vmem:[#allocation2 + $0x8] sm:$0xff] %v667
        // Predicated region
        $region49: #{tpu_custom_call.1} parent=35 // pred_check
          %p670 = pneg %p298
        $region50: #{tpu_custom_call.1} parent=35 // pred_check_branch
          %672 = sbr.rel (%p670) target = $region52
        $region51: #{tpu_custom_call.1} parent=35 // pred_region
          %v673 = vld [vmem:[%s294] sm:$0xff]
          %v674 = vld [vmem:[%s294 + $0x8] sm:$0xff]
          %v675 = vld [vmem:[%s3] sm:$0xf]
          %vm676 = vcmask 31744
          %v678 = vsel %vm676, %v673, 0
          %v681 = vsel %vm676, %v674, 0
          %vm683 = vcmask 1043456
          %v685 = vsel %vm683, %v675, 0
          %687 = vmatprep.subr.mxu0 0.0
          %688 = vmatpush1.msra.mxu0 %v685
          %689 = vmatprep.subr.mxu0 0.0
          %690 = vmatpush1.msra.mxu0 0.0
          %691 = vmatprep.subr.mxu0 0.0
          %692 = vmatpush1.msra.mxu0 0.0
          %693 = vmatprep.subr.mxu0 0.0
          %694 = vmatpush1.msra.mxu0 0.0
          %695 = vmatprep.subr.mxu0 0.0
          %696 = vmatpush1.msra.mxu0 0.0
          %697 = vmatprep.subr.mxu0 0.0
          %698 = vmatpush1.msra.mxu0 0.0
          %699 = vmatprep.subr.mxu0 0.0
          %700 = vmatpush1.msra.mxu0 0.0
          %701 = vmatprep.subr.mxu0 0.0
          %702 = vmatpush1.msra.mxu0 0.0
          %703 = vmatprep.subr.mxu0 0.0
          %704 = vmatpush1.msra.mxu0 0.0
          %705 = vmatprep.subr.mxu0 0.0
          %706 = vmatpush1.msra.mxu0 0.0
          %707 = vmatprep.subr.mxu0 0.0
          %708 = vmatpush1.msra.mxu0 0.0
          %709 = vmatprep.subr.mxu0 0.0
          %710 = vmatpush1.msra.mxu0 0.0
          %711 = vmatprep.subr.mxu0 0.0
          %712 = vmatpush1.msra.mxu0 0.0
          %713 = vmatprep.subr.mxu0 0.0
          %714 = vmatpush1.msra.mxu0 0.0
          %715 = vmatprep.subr.mxu0 0.0
          %716 = vmatpush1.msra.mxu0 0.0
          %717 = vmatprep.subr.mxu0 0.0
          %718 = vmatpush1.msra.mxu0 0.0
          %719 = vmatprep.subr.mxu0 0.0
          %720 = vmatpush1.msra.mxu0 0.0
          %721 = vmatprep.subr.mxu0 0.0
          %722 = vmatpush1.msra.mxu0 0.0
          %723 = vmatprep.subr.mxu0 0.0
          %724 = vmatpush1.msra.mxu0 0.0
          %725 = vmatprep.subr.mxu0 0.0
          %726 = vmatpush1.msra.mxu0 0.0
          %727 = vmatprep.subr.mxu0 0.0
          %728 = vmatpush1.msra.mxu0 0.0
          %729 = vmatprep.subr.mxu0 0.0
          %730 = vmatpush1.msra.mxu0 0.0
          %731 = vmatprep.subr.mxu0 0.0
          %732 = vmatpush1.msra.mxu0 0.0
          %733 = vmatprep.subr.mxu0 0.0
          %734 = vmatpush1.msra.mxu0 0.0
          %735 = vmatprep.subr.mxu0 0.0
          %736 = vmatpush1.msra.mxu0 0.0
          %737 = vmatprep.subr.mxu0 0.0
          %738 = vmatpush1.msra.mxu0 0.0
          %739 = vmatprep.subr.mxu0 0.0
          %740 = vmatpush1.msra.mxu0 0.0
          %741 = vmatprep.subr.mxu0 0.0
          %742 = vmatpush1.msra.mxu0 0.0
          %743 = vmatprep.subr.mxu0 0.0
          %744 = vmatpush1.msra.mxu0 0.0
          %745 = vmatprep.subr.mxu0 0.0
          %746 = vmatpush1.msra.mxu0 0.0
          %747 = vmatprep.subr.mxu0 0.0
          %748 = vmatpush1.msra.mxu0 0.0
          %749 = vmatprep.subr.mxu0 0.0
          %750 = vmatpush1.msra.mxu0 0.0
          %751 = vmatprep.mubr.f32.mxu0 0.0
          %752 = vmatmul.mubr.f32.gmra.mrb[0].mxu0 %v678
          %v753 = vpop.f32.mrb[0].mxu0
          %v754 = vadd.f32 0.0, %v753
          %v755 = vpop.f32.mrb[0].mxu0
          %756 = vmatprep.mubr.f32.mxu0 0.0
          %757 = vmatmul.mubr.f32.gmra.mrb[0].mxu0 %v681
          %v758 = vpop.f32.mrb[0].mxu0
          %v759 = vadd.f32 0.0, %v758
          %v760 = vpop.f32.mrb[0].mxu0
          %761 = vdwg.mxu0
          %v762 = vld [vmem:[#allocation2] sm:$0xff]
          %v763 = vld [vmem:[#allocation2 + $0x8] sm:$0xff]
          %v764 = vadd.f32 %v762, %v754
          %v765 = vadd.f32 %v763, %v759
          %v766 = vmax.f32 %v764, 0.0
          %v767 = vmax.f32 %v765, 0.0
          %768 = vst [vmem:[%s284] sm:$0xff] %v766
          %769 = vst [vmem:[%s284 + $0x8] sm:$0xff] %v767
        $region52: #{tpu_custom_call.1} parent=35 // pred_fallthru
          _
        %s770 = sand.u32 %s151, 1
        %s771 = scalar_lea.sflag [#allocation5], %s770
        %s772 = sand.u32 %s151, 1
        %s773 = smul.addr %s772, 16
        %s774 = scalar_lea.vmem [#allocation8], %s773
        // Predicated region
        $region53: #{tpu_custom_call.1} parent=35 // pred_check
          %p775 = pneg %p161
        $region54: #{tpu_custom_call.1} parent=35 // pred_check_branch
          %777 = sbr.rel (%p775) target = $region56
        $region55: #{tpu_custom_call.1} parent=35 // pred_region
          %s778 = smul.u32 2, %s28
          %s780 = ssub.s32 256, 256
          %781 = vsyncadd %s771, %s780
          %s782 = smul.addr %s27, 2
          %s783 = sadd.s32 %s778, %s782
          %s784 = smul.addr %s783, 128
          %s785 = scalar_lea.hbm %s4, %s784
          %s786 = sshll.u32 %s774, 4
          %s787 = int_to_ptr.vmem [resolvable:$true] %s786
          %792 = dma.vmem_to_hbm [thread:$0]  %s787, 256, %s785, %s771, 128, 128, 8
        $region56: #{tpu_custom_call.1} parent=35 // pred_fallthru
          _
      $region36: #{tpu_custom_call.1} parent=5 // pred_fallthru
        _
      %p793 = scmp.le.s32.totalorder 2, %s17
      // Predicated region
      $region57: #{tpu_custom_call.1} parent=5 // pred_check
        %p794 = pneg %p793
      $region58: #{tpu_custom_call.1} parent=5 // pred_check_branch
        %796 = sbr.rel (%p794) target = $region60
      $region59: #{tpu_custom_call.1} parent=5 // pred_region
        %s797 = ssub.s32 %s17, 2
        // Predicated region
        $region61: #{tpu_custom_call.1} parent=59 // pred_check
          %p798 = pneg %p167
        $region62: #{tpu_custom_call.1} parent=59 // pred_check_branch
          %800 = sbr.rel (%p798) target = $region64
        $region63: #{tpu_custom_call.1} parent=59 // pred_region
          %s801 = sand.u32 %s152, 1
          %s802 = scalar_lea.sflag [#allocation5], %s801
          %s803 = sand.u32 %s152, 1
          %s804 = smul.addr %s803, 16
          %s805 = scalar_lea.vmem [#allocation8], %s804
          %806 = dma.done %s802, 256
        $region64: #{tpu_custom_call.1} parent=59 // pred_fallthru
          _
      $region60: #{tpu_custom_call.1} parent=5 // pred_fallthru
        _
    $region6: #{tpu_custom_call.1} parent=1 // loop_footer
      %s21 = sadd.s32 1, %s17
    $region7: #{tpu_custom_call.1} parent=1 // loop_footer_branch
      %16 = sbr.rel target = $region3
    $region8: #{tpu_custom_call.1} parent=1 // loop_exit
      _
    %807 = vsyncpa [#allocation4], 1
    %s808 = scalar_lea.sflag [#allocation4], 1
    %809 = vsyncpa %s808, 1
    %810 = vsyncpa [#allocation7], 1
    %811 = vsyncpa [#allocation5], 1
    %s812 = scalar_lea.sflag [#allocation5], 1
    %813 = vsyncpa %s812, 1

</llo_original>
